<compile_context>
chip_gen: v5e
topology: v5e:2x2
jax: 0.10.0
libtpu: 0.0.40
codegen_flags: <defaults>
</compile_context>

<pallas_src>
import functools

import jax
import jax.numpy as jnp
from jax.experimental import pallas as pl
from jax.experimental.pallas import tpu as pltpu

HIDDEN = 128
OUT_PAD = 128  # lane-dense fused output width: [action | value | zero pad]


def _round_up(v, m):
    return ((v + m - 1) // m) * m


def _prefer_fused_layer2():
    # 256-deep block-diagonal W2 fills the 256x256 MXU on v6e/v7x; on 128x128
    # MXUs (<= v5) it would waste half the passes, so keep two 128x128 matmuls.
    try:
        kind = jax.devices()[0].device_kind.lower()
    except Exception:
        return True
    return not any(v in kind for v in ("v2", "v3", "v4", "v5"))


def _choose_tile_b(B, tile_b_max):
    """Pick a batch tile (multiple of 16) minimizing padded rows, <= tile_b_max."""
    b16 = _round_up(B, 16)
    cap = min(_round_up(tile_b_max, 16), b16)
    best_t, best_pad = None, None
    for t in range(16, cap + 1, 16):
        pad = -(-B // t) * t
        if best_t is None or pad < best_pad or (pad == best_pad and t > best_t):
            best_t, best_pad = t, pad
    # v7x megacore: keep >=2 grid steps when a single tile would cover B.
    if best_pad // best_t == 1 and best_t % 32 == 0:
        best_t //= 2
    return best_t, best_pad


def _actor_critic_kernel(x_ref, w1_ref, w2_ref, w3_ref, bias_ref, out_ref,
                         *, fuse_l2):
    # bf16 cast happens here (VALU has slack); x arrives as f32 straight from HBM.
    x = x_ref[...].astype(jnp.bfloat16)                       # (TILE_B, L)

    b1 = bias_ref[:, 0:2 * HIDDEN]                            # [ab1 | cb1]
    b3 = bias_ref[:, 4 * HIDDEN:4 * HIDDEN + OUT_PAD]         # padded layer-3 bias

    # ---- layer 1: actor & critic fused along N -> one (L, 256) matmul ----
    h1 = jnp.dot(x, w1_ref[...], preferred_element_type=jnp.float32) + b1
    h1 = jnp.maximum(h1, 0.0).astype(jnp.bfloat16)            # (TILE_B, 256)

    if fuse_l2:
        # ---- layer 2: one block-diagonal (256, 256) matmul (v6e / v7x) ----
        b2 = bias_ref[:, 2 * HIDDEN:4 * HIDDEN]               # [ab2 | cb2]
        h2 = jnp.maximum(
            jnp.dot(h1, w2_ref[...], preferred_element_type=jnp.float32) + b2,
            0.0).astype(jnp.bfloat16)                         # (TILE_B, 256)
        # ---- layer 3: single K=256 matmul -> [action | value | 0-pad] ----
        out = jnp.dot(h2, w3_ref[...], preferred_element_type=jnp.float32) + b3
    else:
        # ---- layer 2: two 128x128 matmuls (v5e and older, 128^2 MXU) ----
        ab2 = bias_ref[:, 2 * HIDDEN:3 * HIDDEN]
        cb2 = bias_ref[:, 3 * HIDDEN:4 * HIDDEN]
        h = jnp.maximum(
            jnp.dot(h1[:, :HIDDEN], w2_ref[:HIDDEN, :HIDDEN],
                    preferred_element_type=jnp.float32) + ab2,
            0.0).astype(jnp.bfloat16)
        g = jnp.maximum(
            jnp.dot(h1[:, HIDDEN:], w2_ref[HIDDEN:, HIDDEN:],
                    preferred_element_type=jnp.float32) + cb2,
            0.0).astype(jnp.bfloat16)
        # ---- layer 3: two K=128 matmuls into the fused padded output ----
        out = (jnp.dot(h, w3_ref[:HIDDEN, :], preferred_element_type=jnp.float32)
               + jnp.dot(g, w3_ref[HIDDEN:, :], preferred_element_type=jnp.float32)
               + b3)

    out_ref[...] = out


def init_params(key, latent_dim, action_dim, hidden=HIDDEN):
    """Deterministic init mimicking torch.nn.Linear (uniform +/- 1/sqrt(fan_in)).

    Weights are stored transposed: shape (in_features, out_features)."""
    def linear(k, fan_in, fan_out):
        kw, kb = jax.random.split(k)
        bound = 1.0 / jnp.sqrt(jnp.float32(fan_in))
        w = jax.random.uniform(kw, (fan_in, fan_out), jnp.float32, -bound, bound)
        b = jax.random.uniform(kb, (1, fan_out), jnp.float32, -bound, bound)
        return w, b

    keys = jax.random.split(key, 6)
    aw1, ab1 = linear(keys[0], latent_dim, hidden)
    aw2, ab2 = linear(keys[1], hidden, hidden)
    aw3, ab3 = linear(keys[2], hidden, action_dim)
    cw1, cb1 = linear(keys[3], latent_dim, hidden)
    cw2, cb2 = linear(keys[4], hidden, hidden)
    cw3, cb3 = linear(keys[5], hidden, 1)
    return (aw1, ab1, aw2, ab2, aw3, ab3, cw1, cb1, cw2, cb2, cw3, cb3)


def pack_params(params, action_dim):
    """One-time host-side packing into 4 lane-dense arrays (bf16 weights, f32 biases).

      w1 (L, 256)      : [aw1 | cw1]
      w2 (256, 256)    : blockdiag(aw2, cw2)   (v5e path slices the diagonal blocks)
      w3 (256, 128)    : rows 0:128 -> aw3 into lanes [0:A), rows 128:256 -> cw3 lane A
      biases (1, 640)  : [ab1|cb1 | ab2|cb2 | padded layer-3 bias]
    """
    assert action_dim + 1 <= OUT_PAD
    (aw1, ab1, aw2, ab2, aw3, ab3, cw1, cb1, cw2, cb2, cw3, cb3) = params

    w1 = jnp.concatenate([aw1, cw1], axis=1).astype(jnp.bfloat16)       # (L, 256)

    w2 = jnp.zeros((2 * HIDDEN, 2 * HIDDEN), jnp.float32)
    w2 = w2.at[:HIDDEN, :HIDDEN].set(aw2)
    w2 = w2.at[HIDDEN:, HIDDEN:].set(cw2)
    w2 = w2.astype(jnp.bfloat16)                                        # (256, 256)

    w3 = jnp.zeros((2 * HIDDEN, OUT_PAD), jnp.float32)
    w3 = w3.at[:HIDDEN, :action_dim].set(aw3)
    w3 = w3.at[HIDDEN:, action_dim:action_dim + 1].set(cw3)
    w3 = w3.astype(jnp.bfloat16)                                        # (256, 128)

    b3 = jnp.zeros((1, OUT_PAD), jnp.float32)
    b3 = b3.at[:, :action_dim].set(ab3)
    b3 = b3.at[:, action_dim:action_dim + 1].set(cb3)
    biases = jnp.concatenate([ab1, cb1, ab2, cb2, b3],
                             axis=1).astype(jnp.float32)                # (1, 640)

    return (w1, w2, w3, biases)


def actor_critic_forward(state_sequence, packed, action_dim, tile_b_max=1024):
    """state_sequence: (B, W, L) or (B, L). Returns (action (B, A), value (B, 1))."""
    B = state_sequence.shape[0]
    # Keep x in f32: the bf16 cast happens in-kernel (no extra HBM round trip).
    x = state_sequence.reshape(B, -1).astype(jnp.float32)    # torch .view(B, -1)
    L = x.shape[1]

    tile_b, b_pad = _choose_tile_b(B, tile_b_max)
    if b_pad != B:
        x = jnp.pad(x, ((0, b_pad - B), (0, 0)))             # padded rows discarded

    w1, w2, w3, biases = packed
    for a in (w1, w2, w3, biases):
        assert a.ndim == 2                                    # full_spec assumes 2D

    fuse_l2 = _prefer_fused_layer2()
    grid = (b_pad // tile_b,)

    def full_spec(arr):
        return pl.BlockSpec(arr.shape, lambda i: (0, 0))      # weights VMEM-resident

    flops = 2 * b_pad * (L * 2 * HIDDEN
                         + (2 * HIDDEN) * (2 * HIDDEN)
                         + (2 * HIDDEN) * OUT_PAD)
    param_bytes = int(sum(a.size * a.dtype.itemsize for a in (w1, w2, w3, biases)))
    bytes_accessed = int(x.size * x.dtype.itemsize) + param_bytes + b_pad * OUT_PAD * 4

    out = pl.pallas_call(
        functools.partial(_actor_critic_kernel, fuse_l2=fuse_l2),
        out_shape=jax.ShapeDtypeStruct((b_pad, OUT_PAD), jnp.float32),
        grid=grid,
        in_specs=[
            pl.BlockSpec((tile_b, L), lambda i: (i, 0)),      # x: tiled over batch
            full_spec(w1), full_spec(w2), full_spec(w3), full_spec(biases),
        ],
        out_specs=pl.BlockSpec((tile_b, OUT_PAD), lambda i: (i, 0)),
        compiler_params=pltpu.CompilerParams(
            dimension_semantics=("parallel",)),               # v7x: shard over TCs
        cost_estimate=pl.CostEstimate(
            flops=flops, transcendentals=0, bytes_accessed=bytes_accessed),
    )(x, w1, w2, w3, biases)

    action = out[:B, :action_dim]
    value = out[:B, action_dim:action_dim + 1]
    return action, value


def reference_forward(state_sequence, params):
    """Pure-JAX reference mirroring the kernel's bf16 casts (f32 accumulation)."""
    (aw1, ab1, aw2, ab2, aw3, ab3, cw1, cb1, cw2, cb2, cw3, cb3) = params
    x = state_sequence.reshape(state_sequence.shape[0], -1)
    xb = x.astype(jnp.bfloat16).astype(jnp.float32)

    def lin(v, w, b):
        return v @ w.astype(jnp.bfloat16).astype(jnp.float32) + b

    h = jnp.maximum(lin(xb, aw1, ab1), 0.0).astype(jnp.bfloat16).astype(jnp.float32)
    h = jnp.maximum(lin(h, aw2, ab2), 0.0).astype(jnp.bfloat16).astype(jnp.float32)
    action = lin(h, aw3, ab3)

    g = jnp.maximum(lin(xb, cw1, cb1), 0.0).astype(jnp.bfloat16).astype(jnp.float32)
    g = jnp.maximum(lin(g, cw2, cb2), 0.0).astype(jnp.bfloat16).astype(jnp.float32)
    value = lin(g, cw3, cb3)
    return action, value


if __name__ == "__main__":
    latent_dim = 32
    action_dim = 4
    batch = 2

    key = jax.random.PRNGKey(0)
    k_params, k_x = jax.random.split(key)

    params = init_params(k_params, latent_dim, action_dim)
    packed = pack_params(params, action_dim)
    # state_sequence flattens to (batch, latent_dim), matching Linear(latent_dim, 128)
    state_sequence = jax.random.normal(k_x, (batch, 1, latent_dim), dtype=jnp.float32)

    fwd = jax.jit(actor_critic_forward, static_argnums=(2,))
    action, value = fwd(state_sequence, packed, action_dim)
    action = jax.block_until_ready(action)
    value = jax.block_until_ready(value)

    ref_action, ref_value = reference_forward(state_sequence, params)
    assert action.shape == (batch, action_dim)
    assert value.shape == (batch, 1)
    assert jnp.allclose(action, ref_action, atol=2e-3, rtol=2e-3)
    assert jnp.allclose(value, ref_value, atol=2e-3, rtol=2e-3)

    print("KERNEL_OK")
</pallas_src>

<mosaic_0001>
module attributes {stable_mosaic.version = 11 : i64} {
  func.func @_actor_critic_kernel(%arg0: i32, %arg1: memref<16x32xf32, #tpu.memory_space<vmem>>, %arg2: memref<32x256xbf16, #tpu.memory_space<vmem>>, %arg3: memref<256x256xbf16, #tpu.memory_space<vmem>>, %arg4: memref<256x128xbf16, #tpu.memory_space<vmem>>, %arg5: memref<1x640xf32, #tpu.memory_space<vmem>>, %arg6: memref<16x128xf32, #tpu.memory_space<vmem>>) attributes {dimension_semantics = [#tpu.dimension_semantics<parallel>], iteration_bounds = array<i64: 1>, scalar_prefetch = 0 : i64, scratch_operands = 0 : i64, tpu.core_type = #tpu.core_type<tc>, window_params = [{transform_indices = @transform_0, window_bounds = array<i64: 16, 32>}, {pipeline_mode = #tpu.pipeline_mode<synchronous>, transform_indices = @transform_1, window_bounds = array<i64: 32, 256>}, {pipeline_mode = #tpu.pipeline_mode<synchronous>, transform_indices = @transform_2, window_bounds = array<i64: 256, 256>}, {pipeline_mode = #tpu.pipeline_mode<synchronous>, transform_indices = @transform_3, window_bounds = array<i64: 256, 128>}, {pipeline_mode = #tpu.pipeline_mode<synchronous>, transform_indices = @transform_4, window_bounds = array<i64: 1, 640>}, {transform_indices = @transform_5, window_bounds = array<i64: 16, 128>}]} {
    %c0 = arith.constant 0 : index
    %c0_0 = arith.constant 0 : index
    %0 = vector.load %arg1[%c0, %c0_0] : memref<16x32xf32, #tpu.memory_space<vmem>>, vector<16x32xf32>
    %1 = arith.truncf %0 : vector<16x32xf32> to vector<16x32xbf16>
    %c0_1 = arith.constant 0 : index
    %c0_2 = arith.constant 0 : index
    %2 = vector.load %arg5[%c0_1, %c0_2] : memref<1x640xf32, #tpu.memory_space<vmem>>, vector<1x256xf32>
    %c0_3 = arith.constant 0 : index
    %c512 = arith.constant 512 : index
    %3 = vector.load %arg5[%c0_3, %c512] : memref<1x640xf32, #tpu.memory_space<vmem>>, vector<1x128xf32>
    %c0_4 = arith.constant 0 : index
    %c0_5 = arith.constant 0 : index
    %4 = vector.load %arg2[%c0_4, %c0_5] : memref<32x256xbf16, #tpu.memory_space<vmem>>, vector<32x256xbf16>
    %cst = arith.constant dense<0.000000e+00> : vector<16x256xf32>
    %5 = tpu.matmul %1, %4, %cst {dimension_numbers = #tpu.dot_dimension_numbers<[1], [0], [0], [1], [0, 0, 1, 1], [], []>} : vector<16x32xbf16>, vector<32x256xbf16>, vector<16x256xf32> -> vector<16x256xf32>
    %6 = vector.broadcast %2 : vector<1x256xf32> to vector<16x256xf32>
    %7 = arith.addf %5, %6 : vector<16x256xf32>
    %cst_6 = arith.constant 0.000000e+00 : f32
    %8 = vector.broadcast %cst_6 : f32 to vector<16x256xf32>
    %9 = arith.maximumf %7, %8 : vector<16x256xf32>
    %10 = arith.truncf %9 : vector<16x256xf32> to vector<16x256xbf16>
    %c0_7 = arith.constant 0 : index
    %c256 = arith.constant 256 : index
    %11 = vector.load %arg5[%c0_7, %c256] : memref<1x640xf32, #tpu.memory_space<vmem>>, vector<1x256xf32>
    %c0_8 = arith.constant 0 : index
    %c0_9 = arith.constant 0 : index
    %12 = vector.load %arg3[%c0_8, %c0_9] : memref<256x256xbf16, #tpu.memory_space<vmem>>, vector<256x256xbf16>
    %cst_10 = arith.constant dense<0.000000e+00> : vector<16x256xf32>
    %13 = tpu.matmul %10, %12, %cst_10 {dimension_numbers = #tpu.dot_dimension_numbers<[1], [0], [0], [1], [0, 0, 1, 1], [], []>} : vector<16x256xbf16>, vector<256x256xbf16>, vector<16x256xf32> -> vector<16x256xf32>
    %14 = vector.broadcast %11 : vector<1x256xf32> to vector<16x256xf32>
    %15 = arith.addf %13, %14 : vector<16x256xf32>
    %cst_11 = arith.constant 0.000000e+00 : f32
    %16 = vector.broadcast %cst_11 : f32 to vector<16x256xf32>
    %17 = arith.maximumf %15, %16 : vector<16x256xf32>
    %18 = arith.truncf %17 : vector<16x256xf32> to vector<16x256xbf16>
    %c0_12 = arith.constant 0 : index
    %c0_13 = arith.constant 0 : index
    %19 = vector.load %arg4[%c0_12, %c0_13] : memref<256x128xbf16, #tpu.memory_space<vmem>>, vector<256x128xbf16>
    %cst_14 = arith.constant dense<0.000000e+00> : vector<16x128xf32>
    %20 = tpu.matmul %18, %19, %cst_14 {dimension_numbers = #tpu.dot_dimension_numbers<[1], [0], [0], [1], [0, 0, 1, 1], [], []>} : vector<16x256xbf16>, vector<256x128xbf16>, vector<16x128xf32> -> vector<16x128xf32>
    %21 = vector.broadcast %3 : vector<1x128xf32> to vector<16x128xf32>
    %22 = arith.addf %20, %21 : vector<16x128xf32>
    %c0_15 = arith.constant 0 : index
    %c0_16 = arith.constant 0 : index
    %23 = vector.load %arg6[%c0_15, %c0_16] : memref<16x128xf32, #tpu.memory_space<vmem>>, vector<16x128xf32>
    tpu.vector_store %arg6[%c0_15, %c0_16], %22 {strides = array<i32>} : memref<16x128xf32, #tpu.memory_space<vmem>>, vector<16x128xf32>,
    return
  }
  func.func @transform_0(%arg0: i32) -> (i32, i32) {
    %c0_i32 = arith.constant 0 : i32
    %c0_i32_0 = arith.constant 0 : i32
    return %arg0, %c0_i32 : i32, i32
  }
  func.func @transform_1(%arg0: i32) -> (i32, i32) {
    %c0_i32 = arith.constant 0 : i32
    %c0_i32_0 = arith.constant 0 : i32
    %c0_i32_1 = arith.constant 0 : i32
    return %c0_i32, %c0_i32_0 : i32, i32
  }
  func.func @transform_2(%arg0: i32) -> (i32, i32) {
    %c0_i32 = arith.constant 0 : i32
    %c0_i32_0 = arith.constant 0 : i32
    %c0_i32_1 = arith.constant 0 : i32
    return %c0_i32, %c0_i32_0 : i32, i32
  }
  func.func @transform_3(%arg0: i32) -> (i32, i32) {
    %c0_i32 = arith.constant 0 : i32
    %c0_i32_0 = arith.constant 0 : i32
    %c0_i32_1 = arith.constant 0 : i32
    return %c0_i32, %c0_i32_0 : i32, i32
  }
  func.func @transform_4(%arg0: i32) -> (i32, i32) {
    %c0_i32 = arith.constant 0 : i32
    %c0_i32_0 = arith.constant 0 : i32
    %c0_i32_1 = arith.constant 0 : i32
    return %c0_i32, %c0_i32_0 : i32, i32
  }
  func.func @transform_5(%arg0: i32) -> (i32, i32) {
    %c0_i32 = arith.constant 0 : i32
    %c0_i32_0 = arith.constant 0 : i32
    return %arg0, %c0_i32 : i32, i32
  }
}

</mosaic_0001>

<llo_original>
// kernel: actor_critic_forward.1
$region0: #{actor_critic_forward.1}
  #allocation0 [shape = 'u32[]', space=smem, size = 0x4, offset = 0x4, fixed_abs, tag = 'smem constant byte address 0x4 - core index']
  #allocation1 [shape = 'u32[72,128]{1,0:T(1,128)}', space=vmem, size = 0x9000, scoped, tag = 'internal scratch']
  %s0 = inlined_call_operand.vmem [shape: f32[16,32], index: 0, kind: input, shape index: {}]
  %s1 = inlined_call_operand.hbm [shape: bf16[32,256], index: 1, kind: input, shape index: {}]
  %s2 = inlined_call_operand.hbm [shape: bf16[256,256], index: 2, kind: input, shape index: {}]
  %s3 = inlined_call_operand.hbm [shape: bf16[256,128], index: 3, kind: input, shape index: {}]
  %s4 = inlined_call_operand.vmem [shape: f32[1,640], index: 4, kind: input, shape index: {}]
  %s5 = inlined_call_operand.vmem [shape: f32[16,128], index: 5, kind: output, shape index: {}]
  %s6 = sld [smem:[#allocation0]]
  $region42: #{actor_critic_forward.1} parent=0
    _
  %s8 = ssub.s32 1, %s6
  %s9 = scalar_select 0, %s8, %s6
  $region1: #{actor_critic_forward.1} parent=0
    #allocation2 [shape = 'u8[16384]{0}', space=vmem, size = 0x4000, scoped, tag = 'input window, operand 1, single buffered']
    #allocation3 [shape = 's32[1]{0}', space=sflag, size = 0x4, scoped, tag = 'scoped memory for actor_critic_forward.1']
    #allocation4 [shape = 'u8[131072]{0}', space=vmem, size = 0x20000, scoped, tag = 'input window, operand 2, single buffered']
    #allocation5 [shape = 's32[1]{0}', space=sflag, size = 0x4, scoped, tag = 'scoped memory for actor_critic_forward.1']
    #allocation6 [shape = 'u8[65536]{0}', space=vmem, size = 0x10000, scoped, tag = 'input window, operand 3, single buffered']
    %10 = vsyncpa [#allocation3], 0
    %11 = vsyncpa [#allocation5], 0
    // Predicated region
    $region2: #{actor_critic_forward.1} parent=1 // pred_check
      _
    $region3: #{actor_critic_forward.1} parent=1 // pred_check_branch
      %13 = sbr.rel (0) target = $region5
    $region4: #{actor_critic_forward.1} parent=1 // pred_region
      _
    $region5: #{actor_critic_forward.1} parent=1 // pred_fallthru
      _
    // Predicated region
    $region6: #{actor_critic_forward.1} parent=1 // pred_check
      _
    $region7: #{actor_critic_forward.1} parent=1 // pred_check_branch
      %15 = sbr.rel (0) target = $region9
    $region8: #{actor_critic_forward.1} parent=1 // pred_region
      %17 = vsyncadd [#allocation3], 0
      %s18 = sshll.u32 %s1, 4
      %s19 = int_to_ptr.hbm [resolvable:$true] %s18
      %s20 = sshll.u32 [#allocation2], 4
      %s21 = int_to_ptr.vmem [resolvable:$true] %s20
      %26 = dma.hbm_to_vmem [thread:$0]  %s19, 512, %s21, [#allocation3], 128, 128, 8
    $region9: #{actor_critic_forward.1} parent=1 // pred_fallthru
      _
    // Predicated region
    $region10: #{actor_critic_forward.1} parent=1 // pred_check
      _
    $region11: #{actor_critic_forward.1} parent=1 // pred_check_branch
      %28 = sbr.rel (0) target = $region13
    $region12: #{actor_critic_forward.1} parent=1 // pred_region
      %30 = vsyncadd [#allocation5], 0
      %s31 = sshll.u32 %s2, 4
      %s32 = int_to_ptr.hbm [resolvable:$true] %s31
      %s33 = sshll.u32 [#allocation4], 4
      %s34 = int_to_ptr.vmem [resolvable:$true] %s33
      %39 = dma.hbm_to_vmem [thread:$0]  %s32, 4096, %s34, [#allocation5], 128, 128, 8
    $region13: #{actor_critic_forward.1} parent=1 // pred_fallthru
      _
    // Predicated region
    $region14: #{actor_critic_forward.1} parent=1 // pred_check
      _
    $region15: #{actor_critic_forward.1} parent=1 // pred_check_branch
      %41 = sbr.rel (0) target = $region17
    $region16: #{actor_critic_forward.1} parent=1 // pred_region
      %43 = vsyncadd [#allocation5], 0
      %s44 = sshll.u32 %s3, 4
      %s45 = int_to_ptr.hbm [resolvable:$true] %s44
      %s46 = sshll.u32 [#allocation6], 4
      %s47 = int_to_ptr.vmem [resolvable:$true] %s46
      %52 = dma.hbm_to_vmem [thread:$0]  %s45, 2048, %s47, [#allocation5], 64, 64, 4
    $region17: #{actor_critic_forward.1} parent=1 // pred_fallthru
      _
    // Predicated region
    $region18: #{actor_critic_forward.1} parent=1 // pred_check
      _
    $region19: #{actor_critic_forward.1} parent=1 // pred_check_branch
      %54 = sbr.rel (0) target = $region21
    $region20: #{actor_critic_forward.1} parent=1 // pred_region
      _
    $region21: #{actor_critic_forward.1} parent=1 // pred_fallthru
      _
    // Predicated region
    $region22: #{actor_critic_forward.1} parent=1 // pred_check
      _
    $region23: #{actor_critic_forward.1} parent=1 // pred_check_branch
      %56 = sbr.rel (0) target = $region25
    $region24: #{actor_critic_forward.1} parent=1 // pred_region
      %58 = dma.done [#allocation3], 512
    $region25: #{actor_critic_forward.1} parent=1 // pred_fallthru
      _
    // Predicated region
    $region26: #{actor_critic_forward.1} parent=1 // pred_check
      _
    $region27: #{actor_critic_forward.1} parent=1 // pred_check_branch
      %60 = sbr.rel (0) target = $region29
    $region28: #{actor_critic_forward.1} parent=1 // pred_region
      %62 = dma.done [#allocation5], 4096
    $region29: #{actor_critic_forward.1} parent=1 // pred_fallthru
      _
    // Predicated region
    $region30: #{actor_critic_forward.1} parent=1 // pred_check
      _
    $region31: #{actor_critic_forward.1} parent=1 // pred_check_branch
      %64 = sbr.rel (0) target = $region33
    $region32: #{actor_critic_forward.1} parent=1 // pred_region
      %66 = dma.done [#allocation5], 2048
    $region33: #{actor_critic_forward.1} parent=1 // pred_fallthru
      _
    %v68 = vld [vmem:[%s0] sm:$0xff]
    %v69 = vld [vmem:[%s0 + $0x8] sm:$0xff]
    %v70 = vpack.c.bf16 %v69, %v68
    %v71 = vld [vmem:[%s4] sm:$0x3]
    %v72 = vld [vmem:[%s4 + $0x4] sm:$0x1]
    %v73 = vld [vmem:[#allocation2] sm:$0xff]
    %v74 = vld [vmem:[#allocation2 + $0x8] sm:$0xff]
    %v75 = vld [vmem:[#allocation2 + $0x10] sm:$0xff]
    %v76 = vld [vmem:[#allocation2 + $0x18] sm:$0xff]
    %v78 = vperm.slane %v71, 0
    %v79 = vperm.slane %v71, 1
    %v86 = vunpack.c.l.b16 %v73
    %v87 = vunpack.c.h.b16 %v73
    %v88 = vunpack.c.l.b16 %v74
    %v89 = vunpack.c.h.b16 %v74
    %v90 = vunpack.c.l.b16 %v75
    %v91 = vunpack.c.h.b16 %v75
    %v92 = vunpack.c.l.b16 %v76
    %v93 = vunpack.c.h.b16 %v76
    %v94 = vpack.c.b16 %v88, %v86
    %v95 = vpack.c.b16 %v89, %v87
    %v96 = vpack.c.b16 %v92, %v90
    %v97 = vpack.c.b16 %v93, %v91
    %vm102 = vcmask 261120
    %v104 = vsel %vm102, %v70, 0
    %106 = vmatpush.bf16.msra.mxu0 0
    %107 = vmatpush.bf16.msra.mxu0 0
    %108 = vmatpush.bf16.msra.mxu0 0
    %109 = vmatpush.bf16.msra.mxu0 0
    %110 = vmatpush.bf16.msra.mxu0 0
    %111 = vmatpush.bf16.msra.mxu0 0
    %112 = vmatpush.bf16.msra.mxu0 %v96
    %113 = vmatpush.bf16.msra.mxu0 %v94
    %114 = vmatmul.bf16.gmra.mxu0 %v104
    %v115 = vpop.f32.mrf.mxu0
    %v116 = vadd.f32 %v78, %v115
    %v117 = vpop.f32.mrf.mxu0
    %v118 = vadd.f32 %v78, %v117
    %119 = vdwg.mxu0
    %120 = vmatpush.bf16.msra.mxu0 0
    %121 = vmatpush.bf16.msra.mxu0 0
    %122 = vmatpush.bf16.msra.mxu0 0
    %123 = vmatpush.bf16.msra.mxu0 0
    %124 = vmatpush.bf16.msra.mxu0 0
    %125 = vmatpush.bf16.msra.mxu0 0
    %126 = vmatpush.bf16.msra.mxu0 %v97
    %127 = vmatpush.bf16.msra.mxu0 %v95
    %128 = vmatmul.bf16.gmra.mxu0 %v104
    %v129 = vpop.f32.mrf.mxu0
    %v130 = vadd.f32 %v79, %v129
    %v131 = vpop.f32.mrf.mxu0
    %v132 = vadd.f32 %v79, %v131
    %133 = vdwg.mxu0
    %v134 = vmax.f32 %v116, 0.0
    %v135 = vmax.f32 %v130, 0.0
    %v136 = vmax.f32 %v118, 0.0
    %v137 = vmax.f32 %v132, 0.0
    %v138 = vpack.c.bf16 %v136, %v134
    %v139 = vpack.c.bf16 %v137, %v135
    %v140 = vld [vmem:[%s4 + $0x2] sm:$0x3]
    %v141 = vld [vmem:[#allocation4] sm:$0xff]
    %v142 = vld [vmem:[#allocation4 + $0x8] sm:$0xff]
    %v143 = vld [vmem:[#allocation4 + $0x10] sm:$0xff]
    %v144 = vld [vmem:[#allocation4 + $0x18] sm:$0xff]
    %v145 = vld [vmem:[#allocation4 + $0x20] sm:$0xff]
    %v146 = vld [vmem:[#allocation4 + $0x28] sm:$0xff]
    %v147 = vld [vmem:[#allocation4 + $0x30] sm:$0xff]
    %v148 = vld [vmem:[#allocation4 + $0x38] sm:$0xff]
    %v149 = vld [vmem:[#allocation4 + $0x40] sm:$0xff]
    %v150 = vld [vmem:[#allocation4 + $0x48] sm:$0xff]
    %v151 = vld [vmem:[#allocation4 + $0x50] sm:$0xff]
    %v152 = vld [vmem:[#allocation4 + $0x58] sm:$0xff]
    %v153 = vld [vmem:[#allocation4 + $0x60] sm:$0xff]
    %v154 = vld [vmem:[#allocation4 + $0x68] sm:$0xff]
    %v155 = vld [vmem:[#allocation4 + $0x70] sm:$0xff]
    %v156 = vld [vmem:[#allocation4 + $0x78] sm:$0xff]
    %v157 = vld [vmem:[#allocation4 + $0x80] sm:$0xff]
    %v158 = vld [vmem:[#allocation4 + $0x88] sm:$0xff]
    %v159 = vld [vmem:[#allocation4 + $0x90] sm:$0xff]
    %v160 = vld [vmem:[#allocation4 + $0x98] sm:$0xff]
    %v161 = vld [vmem:[#allocation4 + $0xa0] sm:$0xff]
    %v162 = vld [vmem:[#allocation4 + $0xa8] sm:$0xff]
    %v163 = vld [vmem:[#allocation4 + $0xb0] sm:$0xff]
    %v164 = vld [vmem:[#allocation4 + $0xb8] sm:$0xff]
    %v165 = vld [vmem:[#allocation4 + $0xc0] sm:$0xff]
    %v166 = vld [vmem:[#allocation4 + $0xc8] sm:$0xff]
    %v167 = vld [vmem:[#allocation4 + $0xd0] sm:$0xff]
    %v168 = vld [vmem:[#allocation4 + $0xd8] sm:$0xff]
    %v169 = vld [vmem:[#allocation4 + $0xe0] sm:$0xff]
    %v170 = vld [vmem:[#allocation4 + $0xe8] sm:$0xff]
    %v171 = vld [vmem:[#allocation4 + $0xf0] sm:$0xff]
    %v172 = vld [vmem:[#allocation4 + $0xf8] sm:$0xff]
    %v174 = vperm.slane %v140, 0
    %v175 = vperm.slane %v140, 1
    %v210 = vunpack.c.l.b16 %v141
    %v211 = vunpack.c.h.b16 %v141
    %v212 = vunpack.c.l.b16 %v142
    %v213 = vunpack.c.h.b16 %v142
    %v214 = vunpack.c.l.b16 %v143
    %v215 = vunpack.c.h.b16 %v143
    %v216 = vunpack.c.l.b16 %v144
    %v217 = vunpack.c.h.b16 %v144
    %v218 = vunpack.c.l.b16 %v145
    %v219 = vunpack.c.h.b16 %v145
    %v220 = vunpack.c.l.b16 %v146
    %v221 = vunpack.c.h.b16 %v146
    %v222 = vunpack.c.l.b16 %v147
    %v223 = vunpack.c.h.b16 %v147
    %v224 = vunpack.c.l.b16 %v148
    %v225 = vunpack.c.h.b16 %v148
    %v226 = vunpack.c.l.b16 %v149
    %v227 = vunpack.c.h.b16 %v149
    %v228 = vunpack.c.l.b16 %v150
    %v229 = vunpack.c.h.b16 %v150
    %v230 = vunpack.c.l.b16 %v151
    %v231 = vunpack.c.h.b16 %v151
    %v232 = vunpack.c.l.b16 %v152
    %v233 = vunpack.c.h.b16 %v152
    %v234 = vunpack.c.l.b16 %v153
    %v235 = vunpack.c.h.b16 %v153
    %v236 = vunpack.c.l.b16 %v154
    %v237 = vunpack.c.h.b16 %v154
    %v238 = vunpack.c.l.b16 %v155
    %v239 = vunpack.c.h.b16 %v155
    %v240 = vunpack.c.l.b16 %v156
    %v241 = vunpack.c.h.b16 %v156
    %v242 = vunpack.c.l.b16 %v157
    %v243 = vunpack.c.h.b16 %v157
    %v244 = vunpack.c.l.b16 %v158
    %v245 = vunpack.c.h.b16 %v158
    %v246 = vunpack.c.l.b16 %v159
    %v247 = vunpack.c.h.b16 %v159
    %v248 = vunpack.c.l.b16 %v160
    %v249 = vunpack.c.h.b16 %v160
    %v250 = vunpack.c.l.b16 %v161
    %v251 = vunpack.c.h.b16 %v161
    %v252 = vunpack.c.l.b16 %v162
    %v253 = vunpack.c.h.b16 %v162
    %v254 = vunpack.c.l.b16 %v163
    %v255 = vunpack.c.h.b16 %v163
    %v256 = vunpack.c.l.b16 %v164
    %v257 = vunpack.c.h.b16 %v164
    %v258 = vunpack.c.l.b16 %v165
    %v259 = vunpack.c.h.b16 %v165
    %v260 = vunpack.c.l.b16 %v166
    %v261 = vunpack.c.h.b16 %v166
    %v262 = vunpack.c.l.b16 %v167
    %v263 = vunpack.c.h.b16 %v167
    %v264 = vunpack.c.l.b16 %v168
    %v265 = vunpack.c.h.b16 %v168
    %v266 = vunpack.c.l.b16 %v169
    %v267 = vunpack.c.h.b16 %v169
    %v268 = vunpack.c.l.b16 %v170
    %v269 = vunpack.c.h.b16 %v170
    %v270 = vunpack.c.l.b16 %v171
    %v271 = vunpack.c.h.b16 %v171
    %v272 = vunpack.c.l.b16 %v172
    %v273 = vunpack.c.h.b16 %v172
    %v274 = vpack.c.b16 %v212, %v210
    %v275 = vpack.c.b16 %v213, %v211
    %v276 = vpack.c.b16 %v216, %v214
    %v277 = vpack.c.b16 %v217, %v215
    %v278 = vpack.c.b16 %v220, %v218
    %v279 = vpack.c.b16 %v221, %v219
    %v280 = vpack.c.b16 %v224, %v222
    %v281 = vpack.c.b16 %v225, %v223
    %v282 = vpack.c.b16 %v228, %v226
    %v283 = vpack.c.b16 %v229, %v227
    %v284 = vpack.c.b16 %v232, %v230
    %v285 = vpack.c.b16 %v233, %v231
    %v286 = vpack.c.b16 %v236, %v234
    %v287 = vpack.c.b16 %v237, %v235
    %v288 = vpack.c.b16 %v240, %v238
    %v289 = vpack.c.b16 %v241, %v239
    %v290 = vpack.c.b16 %v244, %v242
    %v291 = vpack.c.b16 %v245, %v243
    %v292 = vpack.c.b16 %v248, %v246
    %v293 = vpack.c.b16 %v249, %v247
    %v294 = vpack.c.b16 %v252, %v250
    %v295 = vpack.c.b16 %v253, %v251
    %v296 = vpack.c.b16 %v256, %v254
    %v297 = vpack.c.b16 %v257, %v255
    %v298 = vpack.c.b16 %v260, %v258
    %v299 = vpack.c.b16 %v261, %v259
    %v300 = vpack.c.b16 %v264, %v262
    %v301 = vpack.c.b16 %v265, %v263
    %v302 = vpack.c.b16 %v268, %v266
    %v303 = vpack.c.b16 %v269, %v267
    %v304 = vpack.c.b16 %v272, %v270
    %v305 = vpack.c.b16 %v273, %v271
    %338 = vmatpush.bf16.msra.mxu0 %v288
    %339 = vmatpush.bf16.msra.mxu0 %v286
    %340 = vmatpush.bf16.msra.mxu0 %v284
    %341 = vmatpush.bf16.msra.mxu0 %v282
    %342 = vmatpush.bf16.msra.mxu0 %v280
    %343 = vmatpush.bf16.msra.mxu0 %v278
    %344 = vmatpush.bf16.msra.mxu0 %v276
    %345 = vmatpush.bf16.msra.mxu0 %v274
    %346 = vmatmul.bf16.gmra.mxu0 %v138
    %v347 = vpop.f32.mrf.mxu0
    %v348 = vadd.f32 %v174, %v347
    %v349 = vpop.f32.mrf.mxu0
    %v350 = vadd.f32 %v174, %v349
    %351 = vdwg.mxu0
    %352 = vmatpush.bf16.msra.mxu0 %v304
    %353 = vmatpush.bf16.msra.mxu0 %v302
    %354 = vmatpush.bf16.msra.mxu0 %v300
    %355 = vmatpush.bf16.msra.mxu0 %v298
    %356 = vmatpush.bf16.msra.mxu0 %v296
    %357 = vmatpush.bf16.msra.mxu0 %v294
    %358 = vmatpush.bf16.msra.mxu0 %v292
    %359 = vmatpush.bf16.msra.mxu0 %v290
    %360 = vmatmul.bf16.gmra.mxu0 %v139
    %v361 = vpop.f32.mrf.mxu0
    %v362 = vadd.f32 %v348, %v361
    %v363 = vpop.f32.mrf.mxu0
    %v364 = vadd.f32 %v350, %v363
    %365 = vdwg.mxu0
    %366 = vmatpush.bf16.msra.mxu0 %v289
    %367 = vmatpush.bf16.msra.mxu0 %v287
    %368 = vmatpush.bf16.msra.mxu0 %v285
    %369 = vmatpush.bf16.msra.mxu0 %v283
    %370 = vmatpush.bf16.msra.mxu0 %v281
    %371 = vmatpush.bf16.msra.mxu0 %v279
    %372 = vmatpush.bf16.msra.mxu0 %v277
    %373 = vmatpush.bf16.msra.mxu0 %v275
    %374 = vmatmul.bf16.gmra.mxu0 %v138
    %v375 = vpop.f32.mrf.mxu0
    %v376 = vadd.f32 %v175, %v375
    %v377 = vpop.f32.mrf.mxu0
    %v378 = vadd.f32 %v175, %v377
    %379 = vdwg.mxu0
    %380 = vmatpush.bf16.msra.mxu0 %v305
    %381 = vmatpush.bf16.msra.mxu0 %v303
    %382 = vmatpush.bf16.msra.mxu0 %v301
    %383 = vmatpush.bf16.msra.mxu0 %v299
    %384 = vmatpush.bf16.msra.mxu0 %v297
    %385 = vmatpush.bf16.msra.mxu0 %v295
    %386 = vmatpush.bf16.msra.mxu0 %v293
    %387 = vmatpush.bf16.msra.mxu0 %v291
    %388 = vmatmul.bf16.gmra.mxu0 %v139
    %v389 = vpop.f32.mrf.mxu0
    %v390 = vadd.f32 %v376, %v389
    %v391 = vpop.f32.mrf.mxu0
    %v392 = vadd.f32 %v378, %v391
    %393 = vdwg.mxu0
    %v394 = vmax.f32 %v362, 0.0
    %v395 = vmax.f32 %v390, 0.0
    %v396 = vmax.f32 %v364, 0.0
    %v397 = vmax.f32 %v392, 0.0
    %v398 = vpack.c.bf16 %v396, %v394
    %v399 = vpack.c.bf16 %v397, %v395
    %v400 = vld [vmem:[#allocation6] sm:$0xf]
    %v401 = vld [vmem:[#allocation6 + $0x4] sm:$0xf]
    %v402 = vld [vmem:[#allocation6 + $0x8] sm:$0xf]
    %v403 = vld [vmem:[#allocation6 + $0xc] sm:$0xf]
    %v404 = vld [vmem:[#allocation6 + $0x10] sm:$0xf]
    %v405 = vld [vmem:[#allocation6 + $0x14] sm:$0xf]
    %v406 = vld [vmem:[#allocation6 + $0x18] sm:$0xf]
    %v407 = vld [vmem:[#allocation6 + $0x1c] sm:$0xf]
    %v408 = vld [vmem:[#allocation6 + $0x20] sm:$0xf]
    %v409 = vld [vmem:[#allocation6 + $0x24] sm:$0xf]
    %v410 = vld [vmem:[#allocation6 + $0x28] sm:$0xf]
    %v411 = vld [vmem:[#allocation6 + $0x2c] sm:$0xf]
    %v412 = vld [vmem:[#allocation6 + $0x30] sm:$0xf]
    %v413 = vld [vmem:[#allocation6 + $0x34] sm:$0xf]
    %v414 = vld [vmem:[#allocation6 + $0x38] sm:$0xf]
    %v415 = vld [vmem:[#allocation6 + $0x3c] sm:$0xf]
    %v416 = vld [vmem:[#allocation6 + $0x40] sm:$0xf]
    %v417 = vld [vmem:[#allocation6 + $0x44] sm:$0xf]
    %v418 = vld [vmem:[#allocation6 + $0x48] sm:$0xf]
    %v419 = vld [vmem:[#allocation6 + $0x4c] sm:$0xf]
    %v420 = vld [vmem:[#allocation6 + $0x50] sm:$0xf]
    %v421 = vld [vmem:[#allocation6 + $0x54] sm:$0xf]
    %v422 = vld [vmem:[#allocation6 + $0x58] sm:$0xf]
    %v423 = vld [vmem:[#allocation6 + $0x5c] sm:$0xf]
    %v424 = vld [vmem:[#allocation6 + $0x60] sm:$0xf]
    %v425 = vld [vmem:[#allocation6 + $0x64] sm:$0xf]
    %v426 = vld [vmem:[#allocation6 + $0x68] sm:$0xf]
    %v427 = vld [vmem:[#allocation6 + $0x6c] sm:$0xf]
    %v428 = vld [vmem:[#allocation6 + $0x70] sm:$0xf]
    %v429 = vld [vmem:[#allocation6 + $0x74] sm:$0xf]
    %v430 = vld [vmem:[#allocation6 + $0x78] sm:$0xf]
    %v431 = vld [vmem:[#allocation6 + $0x7c] sm:$0xf]
    %v433 = vperm.slane %v72, 0
    %v467 = vunpack.c.l.b16 %v400
    %v468 = vunpack.c.l.b16 %v401
    %v469 = vunpack.c.l.b16 %v402
    %v470 = vunpack.c.l.b16 %v403
    %v471 = vunpack.c.l.b16 %v404
    %v472 = vunpack.c.l.b16 %v405
    %v473 = vunpack.c.l.b16 %v406
    %v474 = vunpack.c.l.b16 %v407
    %v475 = vunpack.c.l.b16 %v408
    %v476 = vunpack.c.l.b16 %v409
    %v477 = vunpack.c.l.b16 %v410
    %v478 = vunpack.c.l.b16 %v411
    %v479 = vunpack.c.l.b16 %v412
    %v480 = vunpack.c.l.b16 %v413
    %v481 = vunpack.c.l.b16 %v414
    %v482 = vunpack.c.l.b16 %v415
    %v483 = vunpack.c.l.b16 %v416
    %v484 = vunpack.c.l.b16 %v417
    %v485 = vunpack.c.l.b16 %v418
    %v486 = vunpack.c.l.b16 %v419
    %v487 = vunpack.c.l.b16 %v420
    %v488 = vunpack.c.l.b16 %v421
    %v489 = vunpack.c.l.b16 %v422
    %v490 = vunpack.c.l.b16 %v423
    %v491 = vunpack.c.l.b16 %v424
    %v492 = vunpack.c.l.b16 %v425
    %v493 = vunpack.c.l.b16 %v426
    %v494 = vunpack.c.l.b16 %v427
    %v495 = vunpack.c.l.b16 %v428
    %v496 = vunpack.c.l.b16 %v429
    %v497 = vunpack.c.l.b16 %v430
    %v498 = vunpack.c.l.b16 %v431
    %v499 = vpack.c.b16 %v468, %v467
    %v500 = vpack.c.b16 %v470, %v469
    %v501 = vpack.c.b16 %v472, %v471
    %v502 = vpack.c.b16 %v474, %v473
    %v503 = vpack.c.b16 %v476, %v475
    %v504 = vpack.c.b16 %v478, %v477
    %v505 = vpack.c.b16 %v480, %v479
    %v506 = vpack.c.b16 %v482, %v481
    %v507 = vpack.c.b16 %v484, %v483
    %v508 = vpack.c.b16 %v486, %v485
    %v509 = vpack.c.b16 %v488, %v487
    %v510 = vpack.c.b16 %v490, %v489
    %v511 = vpack.c.b16 %v492, %v491
    %v512 = vpack.c.b16 %v494, %v493
    %v513 = vpack.c.b16 %v496, %v495
    %v514 = vpack.c.b16 %v498, %v497
    %531 = vmatpush.bf16.msra.mxu0 %v506
    %532 = vmatpush.bf16.msra.mxu0 %v505
    %533 = vmatpush.bf16.msra.mxu0 %v504
    %534 = vmatpush.bf16.msra.mxu0 %v503
    %535 = vmatpush.bf16.msra.mxu0 %v502
    %536 = vmatpush.bf16.msra.mxu0 %v501
    %537 = vmatpush.bf16.msra.mxu0 %v500
    %538 = vmatpush.bf16.msra.mxu0 %v499
    %539 = vmatmul.bf16.gmra.mxu0 %v398
    %v540 = vpop.f32.mrf.mxu0
    %v541 = vadd.f32 %v433, %v540
    %v542 = vpop.f32.mrf.mxu0
    %v543 = vadd.f32 %v433, %v542
    %544 = vdwg.mxu0
    %545 = vmatpush.bf16.msra.mxu0 %v514
    %546 = vmatpush.bf16.msra.mxu0 %v513
    %547 = vmatpush.bf16.msra.mxu0 %v512
    %548 = vmatpush.bf16.msra.mxu0 %v511
    %549 = vmatpush.bf16.msra.mxu0 %v510
    %550 = vmatpush.bf16.msra.mxu0 %v509
    %551 = vmatpush.bf16.msra.mxu0 %v508
    %552 = vmatpush.bf16.msra.mxu0 %v507
    %553 = vmatmul.bf16.gmra.mxu0 %v399
    %v554 = vpop.f32.mrf.mxu0
    %v555 = vadd.f32 %v541, %v554
    %v556 = vpop.f32.mrf.mxu0
    %v557 = vadd.f32 %v543, %v556
    %558 = vdwg.mxu0
    %559 = vst [vmem:[%s5] sm:$0xff] %v555
    %560 = vst [vmem:[%s5 + $0x8] sm:$0xff] %v557
    // Predicated region
    $region34: #{actor_critic_forward.1} parent=1 // pred_check
      _
    $region35: #{actor_critic_forward.1} parent=1 // pred_check_branch
      %562 = sbr.rel (0) target = $region37
    $region36: #{actor_critic_forward.1} parent=1 // pred_region
      _
    $region37: #{actor_critic_forward.1} parent=1 // pred_fallthru
      _
    // Predicated region
    $region38: #{actor_critic_forward.1} parent=1 // pred_check
      _
    $region39: #{actor_critic_forward.1} parent=1 // pred_check_branch
      %564 = sbr.rel (0) target = $region41
    $region40: #{actor_critic_forward.1} parent=1 // pred_region
      _
    $region41: #{actor_critic_forward.1} parent=1 // pred_fallthru
      _
    %565 = vsyncpa [#allocation3], 1
    %566 = vsyncpa [#allocation5], 1

</llo_original>
